<compile_context>
chip_gen: v5e
topology: v5e:2x2
jax: 0.10.0
libtpu: 0.0.40
codegen_flags: <defaults>
</compile_context>

<pallas_src>
import jax
import jax.numpy as jnp
from jax import lax
from jax.experimental import pallas as pl
from jax.experimental.pallas import tpu as pltpu


def _round_up(x: int, m: int) -> int:
    return ((x + m - 1) // m) * m


def _linear_kernel(x_ref, w_ref, b_ref, o_ref):
    # x_ref: (tm, D)   w_ref: (tn, D)   b_ref: (1, tn)   o_ref: (tm, tn)
    acc = lax.dot_general(
        x_ref[...], w_ref[...],
        dimension_numbers=(((1,), (1,)), ((), ())),   # contract on D; RHS kept (V, D)
        preferred_element_type=jnp.float32)
    o_ref[...] = (acc + b_ref[...]).astype(o_ref.dtype)


def masked_gene_id_prediction_head(token_outputs, weight, bias, *,
                                   tm=512, tn=1024,
                                   compute_dtype=jnp.bfloat16,
                                   out_dtype=None):
    """token_outputs: (B, S, D); weight: (V, D) (nn.Linear layout); bias: (V,)."""
    B, S, D = token_outputs.shape
    V = weight.shape[0]
    M = B * S
    out_dtype = token_outputs.dtype if out_dtype is None else out_dtype
    compute_dtype = token_outputs.dtype if compute_dtype is None else compute_dtype
    in_bytes = jnp.dtype(compute_dtype).itemsize
    out_bytes = jnp.dtype(out_dtype).itemsize

    # Clamp tile sizes to the (layout-rounded) problem so tiny problems don't
    # over-pad; sublane tile kept a multiple of 16 (safe for bf16 and f32),
    # lane tile a multiple of 128.
    tm = max(16, min(tm, _round_up(M, 16)))
    tn = max(128, min(tn, _round_up(V, 128)))
    # Keep the resident weight / activation tiles within a sane VMEM budget
    # when d_model is very large (TODO(synk): add a K-reduction grid axis if
    # d_model ever grows past what a single VMEM tile can hold).
    while tn > 128 and tn * D * in_bytes > (8 << 20):
        tn //= 2
    while tm > 16 and tm * D * in_bytes > (4 << 20):
        tm //= 2

    x = token_outputs.reshape(M, D).astype(compute_dtype)
    w = weight.astype(compute_dtype)                     # (V, D) -- no transpose
    b = bias.astype(jnp.float32).reshape(1, V)

    n_v = pl.cdiv(V, tn)   # ragged edges -> partial boundary blocks, no padding copies
    n_m = pl.cdiv(M, tm)

    # Double-buffered working set: x tile + w tile + bias tile + out tile.
    vmem_est = 2 * ((tm * D + tn * D) * in_bytes + tn * 4 + tm * tn * out_bytes)
    # Cap at 64 MiB (v7x physical); never request below the 32 MiB default.
    vmem_limit = int(min(64 * 1024 * 1024, max(2 * vmem_est, 32 * 1024 * 1024)))

    cost = pl.CostEstimate(
        flops=2 * M * D * V,
        transcendentals=0,
        bytes_accessed=(M * D + V * D) * in_bytes + M * V * out_bytes + V * 4,
    )

    out = pl.pallas_call(
        _linear_kernel,
        out_shape=jax.ShapeDtypeStruct((M, V), out_dtype),
        grid_spec=pltpu.PrefetchScalarGridSpec(
            num_scalar_prefetch=0,
            # Vocab axis OUTER ("parallel", megacore-shardable), row axis INNER
            # ("arbitrary", sequential): weight/bias block indices are constant
            # across the inner axis, so the large (tn, D) weight tile stays
            # resident in VMEM and is streamed from HBM exactly once per core.
            grid=(n_v, n_m),
            in_specs=[
                pl.BlockSpec((tm, D), lambda j, i: (i, 0)),   # activation row-tile
                pl.BlockSpec((tn, D), lambda j, i: (j, 0)),   # weight vocab-tile (stationary)
                pl.BlockSpec((1, tn), lambda j, i: (0, j)),   # bias vocab-tile (stationary)
            ],
            out_specs=pl.BlockSpec((tm, tn), lambda j, i: (i, j)),
        ),
        compiler_params=pltpu.CompilerParams(
            dimension_semantics=("parallel", "arbitrary"),
            vmem_limit_bytes=vmem_limit,
        ),
        cost_estimate=cost,
    )(x, w, b)

    return out.reshape(B, S, V)


if __name__ == "__main__":
    # Small shapes consistent with the module's forward.
    batch, seq, d_model, gene_vocab_size = 2, 8, 32, 256

    key = jax.random.PRNGKey(0)
    k_x, k_w, k_b = jax.random.split(key, 3)

    token_outputs = jax.random.normal(k_x, (batch, seq, d_model), dtype=jnp.float32)
    # Deterministic synthetic parameters (nn.Linear: weight (V, D), bias (V,)).
    weight = jax.random.normal(k_w, (gene_vocab_size, d_model), dtype=jnp.float32) * 0.02
    bias = jax.random.normal(k_b, (gene_vocab_size,), dtype=jnp.float32) * 0.02

    # Plain-JAX reference of the same Linear.
    ref = token_outputs @ weight.T + bias

    # Performance-default path: bf16 operands, f32 accumulation, f32 logits.
    logits_bf16 = masked_gene_id_prediction_head(token_outputs, weight, bias)
    logits_bf16 = jax.block_until_ready(logits_bf16)
    assert logits_bf16.shape == (batch, seq, gene_vocab_size)
    assert logits_bf16.dtype == token_outputs.dtype
    assert jnp.allclose(logits_bf16, ref, atol=1e-2, rtol=1e-2)

    # Full-precision path (matches the nn.Linear semantics closely).
    logits_f32 = masked_gene_id_prediction_head(
        token_outputs, weight, bias, compute_dtype=jnp.float32)
    logits_f32 = jax.block_until_ready(logits_f32)
    assert logits_f32.shape == (batch, seq, gene_vocab_size)
    assert jnp.allclose(logits_f32, ref, atol=1e-4, rtol=1e-4)

    print("KERNEL_OK")
</pallas_src>

<mosaic_0001>
module attributes {stable_mosaic.version = 11 : i64} {
  func.func @_linear_kernel(%arg0: i32, %arg1: i32, %arg2: memref<16x32xbf16, #tpu.memory_space<vmem>>, %arg3: memref<256x32xbf16, #tpu.memory_space<vmem>>, %arg4: memref<1x256xf32, #tpu.memory_space<vmem>>, %arg5: memref<16x256xf32, #tpu.memory_space<vmem>>) attributes {dimension_semantics = [#tpu.dimension_semantics<parallel>, #tpu.dimension_semantics<arbitrary>], iteration_bounds = array<i64: 1, 1>, scalar_prefetch = 0 : i64, scratch_operands = 0 : i64, tpu.core_type = #tpu.core_type<tc>, window_params = [{transform_indices = @transform_0, window_bounds = array<i64: 16, 32>}, {transform_indices = @transform_1, window_bounds = array<i64: 256, 32>}, {transform_indices = @transform_2, window_bounds = array<i64: 1, 256>}, {transform_indices = @transform_3, window_bounds = array<i64: 16, 256>}]} {
    %c0 = arith.constant 0 : index
    %c0_0 = arith.constant 0 : index
    %0 = vector.load %arg2[%c0, %c0_0] : memref<16x32xbf16, #tpu.memory_space<vmem>>, vector<16x32xbf16>
    %c0_1 = arith.constant 0 : index
    %c0_2 = arith.constant 0 : index
    %1 = vector.load %arg3[%c0_1, %c0_2] : memref<256x32xbf16, #tpu.memory_space<vmem>>, vector<256x32xbf16>
    %cst = arith.constant dense<0.000000e+00> : vector<16x256xf32>
    %2 = tpu.matmul %0, %1, %cst {dimension_numbers = #tpu.dot_dimension_numbers<[1], [1], [0], [0], [0, 0, 1, 0], [], []>} : vector<16x32xbf16>, vector<256x32xbf16>, vector<16x256xf32> -> vector<16x256xf32>
    %c0_3 = arith.constant 0 : index
    %c0_4 = arith.constant 0 : index
    %3 = vector.load %arg4[%c0_3, %c0_4] : memref<1x256xf32, #tpu.memory_space<vmem>>, vector<1x256xf32>
    %4 = vector.broadcast %3 : vector<1x256xf32> to vector<16x256xf32>
    %5 = arith.addf %2, %4 : vector<16x256xf32>
    %c0_5 = arith.constant 0 : index
    %c0_6 = arith.constant 0 : index
    %6 = vector.load %arg5[%c0_5, %c0_6] : memref<16x256xf32, #tpu.memory_space<vmem>>, vector<16x256xf32>
    tpu.vector_store %arg5[%c0_5, %c0_6], %5 {strides = array<i32>} : memref<16x256xf32, #tpu.memory_space<vmem>>, vector<16x256xf32>,
    return
  }
  func.func @transform_0(%arg0: i32, %arg1: i32) -> (i32, i32) {
    %c0_i32 = arith.constant 0 : i32
    %c0_i32_0 = arith.constant 0 : i32
    return %arg1, %c0_i32 : i32, i32
  }
  func.func @transform_1(%arg0: i32, %arg1: i32) -> (i32, i32) {
    %c0_i32 = arith.constant 0 : i32
    %c0_i32_0 = arith.constant 0 : i32
    return %arg0, %c0_i32 : i32, i32
  }
  func.func @transform_2(%arg0: i32, %arg1: i32) -> (i32, i32) {
    %c0_i32 = arith.constant 0 : i32
    %c0_i32_0 = arith.constant 0 : i32
    return %c0_i32, %arg0 : i32, i32
  }
  func.func @transform_3(%arg0: i32, %arg1: i32) -> (i32, i32) {
    %c0_i32 = arith.constant 0 : i32
    return %arg1, %arg0 : i32, i32
  }
}

</mosaic_0001>

<llo_original>
// kernel: tpu_custom_call.1
$region0: #{tpu_custom_call.1}
  #allocation0 [shape = 'u32[]', space=smem, size = 0x4, offset = 0x4, fixed_abs, tag = 'smem constant byte address 0x4 - core index']
  #allocation1 [shape = 'u32[72,128]{1,0:T(1,128)}', space=vmem, size = 0x9000, scoped, tag = 'internal scratch']
  %s0 = inlined_call_operand.vmem [shape: bf16[16,32], index: 0, kind: input, shape index: {}]
  %s1 = inlined_call_operand.vmem [shape: bf16[256,32], index: 1, kind: input, shape index: {}]
  %s2 = inlined_call_operand.vmem [shape: f32[1,256], index: 2, kind: input, shape index: {}]
  %s3 = inlined_call_operand.hbm [shape: f32[16,256], index: 3, kind: output, shape index: {}]
  %s4 = sld [smem:[#allocation0]]
  $region22: #{tpu_custom_call.1} parent=0
    _
  %s6 = ssub.s32 1, %s4
  %s7 = scalar_select 0, %s6, %s4
  $region1: #{tpu_custom_call.1} parent=0
    #allocation2 [shape = 'u8[16384]{0}', space=vmem, size = 0x4000, scoped, tag = 'output window, operand 0, single buffered']
    #allocation3 [shape = 's32[1]{0}', space=sflag, size = 0x4, scoped, tag = 'scoped memory for tpu_custom_call.1']
    %8 = vsyncpa [#allocation3], 0
    // Predicated region
    $region2: #{tpu_custom_call.1} parent=1 // pred_check
      _
    $region3: #{tpu_custom_call.1} parent=1 // pred_check_branch
      %10 = sbr.rel (0) target = $region5
    $region4: #{tpu_custom_call.1} parent=1 // pred_region
      _
    $region5: #{tpu_custom_call.1} parent=1 // pred_fallthru
      _
    // Predicated region
    $region6: #{tpu_custom_call.1} parent=1 // pred_check
      _
    $region7: #{tpu_custom_call.1} parent=1 // pred_check_branch
      %12 = sbr.rel (0) target = $region9
    $region8: #{tpu_custom_call.1} parent=1 // pred_region
      _
    $region9: #{tpu_custom_call.1} parent=1 // pred_fallthru
      _
    // Predicated region
    $region10: #{tpu_custom_call.1} parent=1 // pred_check
      _
    $region11: #{tpu_custom_call.1} parent=1 // pred_check_branch
      %14 = sbr.rel (0) target = $region13
    $region12: #{tpu_custom_call.1} parent=1 // pred_region
      _
    $region13: #{tpu_custom_call.1} parent=1 // pred_fallthru
      _
    %v15 = vld [vmem:[%s0] sm:$0xf]
    %v16 = vld [vmem:[%s0 + $0x4] sm:$0xf]
    %v17 = vld [vmem:[%s1] sm:$0xf]
    %v18 = vld [vmem:[%s1 + $0x4] sm:$0xf]
    %v19 = vld [vmem:[%s1 + $0x8] sm:$0xf]
    %v20 = vld [vmem:[%s1 + $0xc] sm:$0xf]
    %v21 = vld [vmem:[%s1 + $0x10] sm:$0xf]
    %v22 = vld [vmem:[%s1 + $0x14] sm:$0xf]
    %v23 = vld [vmem:[%s1 + $0x18] sm:$0xf]
    %v24 = vld [vmem:[%s1 + $0x1c] sm:$0xf]
    %v25 = vld [vmem:[%s1 + $0x20] sm:$0xf]
    %v26 = vld [vmem:[%s1 + $0x24] sm:$0xf]
    %v27 = vld [vmem:[%s1 + $0x28] sm:$0xf]
    %v28 = vld [vmem:[%s1 + $0x2c] sm:$0xf]
    %v29 = vld [vmem:[%s1 + $0x30] sm:$0xf]
    %v30 = vld [vmem:[%s1 + $0x34] sm:$0xf]
    %v31 = vld [vmem:[%s1 + $0x38] sm:$0xf]
    %v32 = vld [vmem:[%s1 + $0x3c] sm:$0xf]
    %v33 = vld [vmem:[%s1 + $0x40] sm:$0xf]
    %v34 = vld [vmem:[%s1 + $0x44] sm:$0xf]
    %v35 = vld [vmem:[%s1 + $0x48] sm:$0xf]
    %v36 = vld [vmem:[%s1 + $0x4c] sm:$0xf]
    %v37 = vld [vmem:[%s1 + $0x50] sm:$0xf]
    %v38 = vld [vmem:[%s1 + $0x54] sm:$0xf]
    %v39 = vld [vmem:[%s1 + $0x58] sm:$0xf]
    %v40 = vld [vmem:[%s1 + $0x5c] sm:$0xf]
    %v41 = vld [vmem:[%s1 + $0x60] sm:$0xf]
    %v42 = vld [vmem:[%s1 + $0x64] sm:$0xf]
    %v43 = vld [vmem:[%s1 + $0x68] sm:$0xf]
    %v44 = vld [vmem:[%s1 + $0x6c] sm:$0xf]
    %v45 = vld [vmem:[%s1 + $0x70] sm:$0xf]
    %v46 = vld [vmem:[%s1 + $0x74] sm:$0xf]
    %v47 = vld [vmem:[%s1 + $0x78] sm:$0xf]
    %v48 = vld [vmem:[%s1 + $0x7c] sm:$0xf]
    %v49 = vld [vmem:[%s2] sm:$0x3]
    %v51 = vperm.slane %v49, 0
    %v52 = vperm.slane %v49, 1
    %v57 = vunpack.c.l.b16 %v15
    %v58 = vunpack.c.l.b16 %v16
    %v59 = vpack.c.b16 %v58, %v57
    %v92 = vunpack.c.l.b16 %v17
    %v93 = vunpack.c.l.b16 %v18
    %v94 = vunpack.c.l.b16 %v19
    %v95 = vunpack.c.l.b16 %v20
    %v96 = vunpack.c.l.b16 %v21
    %v97 = vunpack.c.l.b16 %v22
    %v98 = vunpack.c.l.b16 %v23
    %v99 = vunpack.c.l.b16 %v24
    %v100 = vunpack.c.l.b16 %v25
    %v101 = vunpack.c.l.b16 %v26
    %v102 = vunpack.c.l.b16 %v27
    %v103 = vunpack.c.l.b16 %v28
    %v104 = vunpack.c.l.b16 %v29
    %v105 = vunpack.c.l.b16 %v30
    %v106 = vunpack.c.l.b16 %v31
    %v107 = vunpack.c.l.b16 %v32
    %v108 = vunpack.c.l.b16 %v33
    %v109 = vunpack.c.l.b16 %v34
    %v110 = vunpack.c.l.b16 %v35
    %v111 = vunpack.c.l.b16 %v36
    %v112 = vunpack.c.l.b16 %v37
    %v113 = vunpack.c.l.b16 %v38
    %v114 = vunpack.c.l.b16 %v39
    %v115 = vunpack.c.l.b16 %v40
    %v116 = vunpack.c.l.b16 %v41
    %v117 = vunpack.c.l.b16 %v42
    %v118 = vunpack.c.l.b16 %v43
    %v119 = vunpack.c.l.b16 %v44
    %v120 = vunpack.c.l.b16 %v45
    %v121 = vunpack.c.l.b16 %v46
    %v122 = vunpack.c.l.b16 %v47
    %v123 = vunpack.c.l.b16 %v48
    %v124 = vpack.c.b16 %v93, %v92
    %v125 = vpack.c.b16 %v95, %v94
    %v126 = vpack.c.b16 %v97, %v96
    %v127 = vpack.c.b16 %v99, %v98
    %v128 = vpack.c.b16 %v101, %v100
    %v129 = vpack.c.b16 %v103, %v102
    %v130 = vpack.c.b16 %v105, %v104
    %v131 = vpack.c.b16 %v107, %v106
    %v132 = vpack.c.b16 %v109, %v108
    %v133 = vpack.c.b16 %v111, %v110
    %v134 = vpack.c.b16 %v113, %v112
    %v135 = vpack.c.b16 %v115, %v114
    %v136 = vpack.c.b16 %v117, %v116
    %v137 = vpack.c.b16 %v119, %v118
    %v138 = vpack.c.b16 %v121, %v120
    %v139 = vpack.c.b16 %v123, %v122
    %vm140 = vcmask 261120
    %v142 = vsel %vm140, %v59, 0
    %v145 = vsel %vm140, %v124, 0
    %v148 = vsel %vm140, %v125, 0
    %v151 = vsel %vm140, %v126, 0
    %v154 = vsel %vm140, %v127, 0
    %v157 = vsel %vm140, %v128, 0
    %v160 = vsel %vm140, %v129, 0
    %v163 = vsel %vm140, %v130, 0
    %v166 = vsel %vm140, %v131, 0
    %v169 = vsel %vm140, %v132, 0
    %v172 = vsel %vm140, %v133, 0
    %v175 = vsel %vm140, %v134, 0
    %v178 = vsel %vm140, %v135, 0
    %v181 = vsel %vm140, %v136, 0
    %v184 = vsel %vm140, %v137, 0
    %v187 = vsel %vm140, %v138, 0
    %v190 = vsel %vm140, %v139, 0
    %192 = vmatpush.bf16.xpose.msra.mxu0 %v166
    %193 = vmatpush.bf16.xpose.msra.mxu0 %v163
    %194 = vmatpush.bf16.xpose.msra.mxu0 %v160
    %195 = vmatpush.bf16.xpose.msra.mxu0 %v157
    %196 = vmatpush.bf16.xpose.msra.mxu0 %v154
    %197 = vmatpush.bf16.xpose.msra.mxu0 %v151
    %198 = vmatpush.bf16.xpose.msra.mxu0 %v148
    %199 = vmatpush.bf16.xpose.msra.mxu0 %v145
    %200 = vmatmul.bf16.gmra.mxu0 %v142
    %v201 = vpop.f32.mrf.mxu0
    %v202 = vadd.f32 %v51, %v201
    %v203 = vpop.f32.mrf.mxu0
    %v204 = vadd.f32 %v51, %v203
    %205 = vdwg.mxu0
    %206 = vmatpush.bf16.xpose.msra.mxu0 %v190
    %207 = vmatpush.bf16.xpose.msra.mxu0 %v187
    %208 = vmatpush.bf16.xpose.msra.mxu0 %v184
    %209 = vmatpush.bf16.xpose.msra.mxu0 %v181
    %210 = vmatpush.bf16.xpose.msra.mxu0 %v178
    %211 = vmatpush.bf16.xpose.msra.mxu0 %v175
    %212 = vmatpush.bf16.xpose.msra.mxu0 %v172
    %213 = vmatpush.bf16.xpose.msra.mxu0 %v169
    %214 = vmatmul.bf16.gmra.mxu0 %v142
    %v215 = vpop.f32.mrf.mxu0
    %v216 = vadd.f32 %v52, %v215
    %v217 = vpop.f32.mrf.mxu0
    %v218 = vadd.f32 %v52, %v217
    %219 = vdwg.mxu0
    %220 = vst [vmem:[#allocation2] sm:$0xff] %v202
    %221 = vst [vmem:[#allocation2 + $0x8] sm:$0xff] %v216
    %222 = vst [vmem:[#allocation2 + $0x10] sm:$0xff] %v204
    %223 = vst [vmem:[#allocation2 + $0x18] sm:$0xff] %v218
    // Predicated region
    $region14: #{tpu_custom_call.1} parent=1 // pred_check
      _
    $region15: #{tpu_custom_call.1} parent=1 // pred_check_branch
      %225 = sbr.rel (0) target = $region17
    $region16: #{tpu_custom_call.1} parent=1 // pred_region
      %227 = vsyncadd [#allocation3], 0
      %s228 = sshll.u32 [#allocation2], 4
      %s229 = int_to_ptr.vmem [resolvable:$true] %s228
      %s230 = sshll.u32 %s3, 4
      %s231 = int_to_ptr.hbm [resolvable:$true] %s230
      %236 = dma.vmem_to_hbm [thread:$0]  %s229, 512, %s231, [#allocation3], 256, 256, 16
    $region17: #{tpu_custom_call.1} parent=1 // pred_fallthru
      _
    // Predicated region
    $region18: #{tpu_custom_call.1} parent=1 // pred_check
      _
    $region19: #{tpu_custom_call.1} parent=1 // pred_check_branch
      %238 = sbr.rel (0) target = $region21
    $region20: #{tpu_custom_call.1} parent=1 // pred_region
      %240 = dma.done [#allocation3], 512
    $region21: #{tpu_custom_call.1} parent=1 // pred_fallthru
      _
    %241 = vsyncpa [#allocation3], 1

</llo_original>
